<compile_context>
chip_gen: v7x
topology: tpu7x:2x2x1
jax: 0.10.0
libtpu: 0.0.40
codegen_flags: <defaults>
</compile_context>

<pallas_src>
import jax
import jax.numpy as jnp
import numpy as np
from jax.experimental import pallas as pl
from jax.experimental.pallas import tpu as pltpu

BUCKET_BINS = [0, 1, 2, 3, 4, 5, 7, 8, 15, 16, 31, 32, 63, 64]


def bucket_id(width):
    # mirrors SpanRepresentation.bucket_embedding: last ix with width >= bin
    return max(ix for ix, v in enumerate(BUCKET_BINS) if width >= v)


def enumerate_span_indices(batch_max_seq_len, span_maximum_length):
    # mirrors the use_dep_span=False branch of forward()
    span_indices = []
    max_window = min(batch_max_seq_len, span_maximum_length)
    for window in range(1, max_window + 1):
        for start in range(0, batch_max_seq_len - window + 1):
            span_indices.append((start, start + window))
    return span_indices


def _round_up(a, m):
    return ((a + m - 1) // m) * m


def _span_repr_kernel(start_oh_ref, end_oh_ref, wrows_ref, x_ref, out_ref):
    # start_oh_ref / end_oh_ref: (TILE_N, L) one-hot selection matrices, x.dtype
    # wrows_ref:                 (TILE_N, W) pre-gathered width-bucket rows, x.dtype
    # x_ref:                     (1, L, H)   one batch row
    # out_ref:                   (1, TILE_N, 2H + W) fused output slab
    x = x_ref[0]                                  # (L, H), stays in x.dtype
    H = x.shape[1]
    W = wrows_ref.shape[1]

    # Exact row gather via one-hot matmul on the MXU (single nonzero per row),
    # accumulated in f32.
    start_rows = jnp.dot(start_oh_ref[...], x, preferred_element_type=jnp.float32)
    end_rows = jnp.dot(end_oh_ref[...], x, preferred_element_type=jnp.float32)

    out_ref[0, :, 0:H] = start_rows.astype(out_ref.dtype)
    out_ref[0, :, H:2 * H] = end_rows.astype(out_ref.dtype)
    out_ref[0, :, 2 * H:2 * H + W] = wrows_ref[...]


def span_representation(x, span_width_embedding, span_indices, tile_n=None):
    """Fused (B, N, 2H + W) span representation; == torch.stack(spans, dim=1)."""
    B, L, H = x.shape
    _, W = span_width_embedding.shape
    N = len(span_indices)

    # Span-tile size: multiple of 8, target ~512 for real shapes, capped at N.
    if tile_n is None:
        tile_n = min(512, _round_up(N, 8))
    tile_n = _round_up(tile_n, 8)
    n_pad = _round_up(N, tile_n)
    n_tiles = n_pad // tile_n

    # Static (compile-time) one-hot selection matrices and width-bucket ids.
    start_oh_np = np.zeros((n_pad, L), dtype=np.float32)
    end_oh_np = np.zeros((n_pad, L), dtype=np.float32)
    bkt_ids_np = np.zeros((n_pad,), dtype=np.int32)
    for i, (s0, s1) in enumerate(span_indices):
        start_oh_np[i, s0] = 1.0
        end_oh_np[i, s1 - 1] = 1.0
        bkt_ids_np[i] = bucket_id(abs(s1 - s0))
    start_oh = jnp.asarray(start_oh_np).astype(x.dtype)
    end_oh = jnp.asarray(end_oh_np).astype(x.dtype)

    # Batch-independent width-bucket rows: gather once outside the kernel.
    width_rows = jnp.asarray(span_width_embedding)[jnp.asarray(bkt_ids_np)]
    width_rows = width_rows.astype(x.dtype)                      # (n_pad, W)

    F = 2 * H + W
    grid_spec = pltpu.PrefetchScalarGridSpec(
        num_scalar_prefetch=0,
        grid=(n_tiles, B),                        # span tiles leading (v7x megacore)
        in_specs=[
            pl.BlockSpec((tile_n, L), lambda n, b: (n, 0)),     # start one-hot
            pl.BlockSpec((tile_n, L), lambda n, b: (n, 0)),     # end one-hot
            pl.BlockSpec((tile_n, W), lambda n, b: (n, 0)),     # width rows
            pl.BlockSpec((1, L, H), lambda n, b: (b, 0, 0)),    # x, one batch row
        ],
        out_specs=pl.BlockSpec((1, tile_n, F), lambda n, b: (b, n, 0)),
    )
    out = pl.pallas_call(
        _span_repr_kernel,
        out_shape=jax.ShapeDtypeStruct((B, n_pad, F), x.dtype),
        grid_spec=grid_spec,
        compiler_params=pltpu.CompilerParams(
            dimension_semantics=("parallel", "parallel")),
    )(start_oh, end_oh, width_rows, x)

    if n_pad != N:
        out = out[:, :N]
    return out


def ref_span_representation(x, wemb, span_indices):
    # pure-JAX reference reproducing the PyTorch list-comprehension + stack
    B = x.shape[0]
    spans = []
    for (s0, s1) in span_indices:
        w = wemb[bucket_id(abs(s1 - s0))]
        row = jnp.concatenate(
            [x[:, s0, :], x[:, s1 - 1, :], jnp.tile(w[None, :], (B, 1))], axis=1)
        spans.append(row)
    return jnp.stack(spans, axis=1)


if __name__ == "__main__":
    # small shapes consistent with the module
    B, L, H = 2, 8, 32                 # batch, batch_max_seq_len, hidden
    span_width_dim = 16
    span_maximum_length = 4

    key = jax.random.PRNGKey(0)
    kx, kw = jax.random.split(key)
    x = jax.random.normal(kx, (B, L, H), dtype=jnp.float32)
    # nn.Embedding(len(bucket_bins), span_width_dim) weight, deterministic init
    span_width_embedding = jax.random.normal(
        kw, (len(BUCKET_BINS), span_width_dim), dtype=jnp.float32)

    span_indices = enumerate_span_indices(L, span_maximum_length)
    label_lst = [0] * len(span_indices)  # passed through unchanged in this branch

    span_r = span_representation(x, span_width_embedding, span_indices)
    span_r = jax.block_until_ready(span_r)

    ref = ref_span_representation(x, span_width_embedding, span_indices)
    np.testing.assert_allclose(np.asarray(span_r), np.asarray(ref),
                               rtol=1e-5, atol=1e-5)
    print("KERNEL_OK")
</pallas_src>

<mosaic_0001>
module attributes {stable_mosaic.version = 11 : i64} {
  func.func @_span_repr_kernel(%arg0: i32, %arg1: i32, %arg2: memref<32x8xf32, #tpu.memory_space<vmem>>, %arg3: memref<32x8xf32, #tpu.memory_space<vmem>>, %arg4: memref<32x16xf32, #tpu.memory_space<vmem>>, %arg5: memref<1x8x32xf32, #tpu.memory_space<vmem>>, %arg6: memref<1x32x80xf32, #tpu.memory_space<vmem>>) attributes {dimension_semantics = [#tpu.dimension_semantics<parallel>, #tpu.dimension_semantics<parallel>], iteration_bounds = array<i64: 1, 2>, scalar_prefetch = 0 : i64, scratch_operands = 0 : i64, tpu.core_type = #tpu.core_type<tc>, window_params = [{transform_indices = @transform_0, window_bounds = array<i64: 32, 8>}, {transform_indices = @transform_1, window_bounds = array<i64: 32, 8>}, {transform_indices = @transform_2, window_bounds = array<i64: 32, 16>}, {transform_indices = @transform_3, window_bounds = array<i64: 1, 8, 32>}, {transform_indices = @transform_4, window_bounds = array<i64: 1, 32, 80>}]} {
    %c0 = arith.constant 0 : index
    %c0_0 = arith.constant 0 : index
    %c0_1 = arith.constant 0 : index
    %0 = vector.load %arg5[%c0, %c0_0, %c0_1] : memref<1x8x32xf32, #tpu.memory_space<vmem>>, vector<1x8x32xf32>
    %1 = vector.shape_cast %0 : vector<1x8x32xf32> to vector<8x32xf32>
    %c0_2 = arith.constant 0 : index
    %c0_3 = arith.constant 0 : index
    %2 = vector.load %arg2[%c0_2, %c0_3] : memref<32x8xf32, #tpu.memory_space<vmem>>, vector<32x8xf32>
    %cst = arith.constant dense<0.000000e+00> : vector<32x32xf32>
    %3 = tpu.matmul %2, %1, %cst {dimension_numbers = #tpu.dot_dimension_numbers<[1], [0], [0], [1], [0, 0, 1, 1], [], []>} : vector<32x8xf32>, vector<8x32xf32>, vector<32x32xf32> -> vector<32x32xf32>
    %c0_4 = arith.constant 0 : index
    %c0_5 = arith.constant 0 : index
    %4 = vector.load %arg3[%c0_4, %c0_5] : memref<32x8xf32, #tpu.memory_space<vmem>>, vector<32x8xf32>
    %cst_6 = arith.constant dense<0.000000e+00> : vector<32x32xf32>
    %5 = tpu.matmul %4, %1, %cst_6 {dimension_numbers = #tpu.dot_dimension_numbers<[1], [0], [0], [1], [0, 0, 1, 1], [], []>} : vector<32x8xf32>, vector<8x32xf32>, vector<32x32xf32> -> vector<32x32xf32>
    %c0_7 = arith.constant 0 : index
    %c0_8 = arith.constant 0 : index
    %c0_9 = arith.constant 0 : index
    %6 = vector.load %arg6[%c0_7, %c0_8, %c0_9] : memref<1x32x80xf32, #tpu.memory_space<vmem>>, vector<1x32x32xf32>
    %7 = vector.shape_cast %6 : vector<1x32x32xf32> to vector<32x32xf32>
    %8 = vector.shape_cast %3 : vector<32x32xf32> to vector<1x32x32xf32>
    tpu.vector_store %arg6[%c0_7, %c0_8, %c0_9], %8 {strides = array<i32>} : memref<1x32x80xf32, #tpu.memory_space<vmem>>, vector<1x32x32xf32>,
    %c0_10 = arith.constant 0 : index
    %c0_11 = arith.constant 0 : index
    %c32 = arith.constant 32 : index
    %9 = vector.load %arg6[%c0_10, %c0_11, %c32] : memref<1x32x80xf32, #tpu.memory_space<vmem>>, vector<1x32x32xf32>
    %10 = vector.shape_cast %9 : vector<1x32x32xf32> to vector<32x32xf32>
    %11 = vector.shape_cast %5 : vector<32x32xf32> to vector<1x32x32xf32>
    tpu.vector_store %arg6[%c0_10, %c0_11, %c32], %11 {strides = array<i32>} : memref<1x32x80xf32, #tpu.memory_space<vmem>>, vector<1x32x32xf32>,
    %c0_12 = arith.constant 0 : index
    %c0_13 = arith.constant 0 : index
    %12 = vector.load %arg4[%c0_12, %c0_13] : memref<32x16xf32, #tpu.memory_space<vmem>>, vector<32x16xf32>
    %c0_14 = arith.constant 0 : index
    %c0_15 = arith.constant 0 : index
    %c64 = arith.constant 64 : index
    %13 = vector.load %arg6[%c0_14, %c0_15, %c64] : memref<1x32x80xf32, #tpu.memory_space<vmem>>, vector<1x32x16xf32>
    %14 = vector.shape_cast %13 : vector<1x32x16xf32> to vector<32x16xf32>
    %15 = vector.shape_cast %12 : vector<32x16xf32> to vector<1x32x16xf32>
    tpu.vector_store %arg6[%c0_14, %c0_15, %c64], %15 {strides = array<i32>} : memref<1x32x80xf32, #tpu.memory_space<vmem>>, vector<1x32x16xf32>,
    return
  }
  func.func @transform_0(%arg0: i32, %arg1: i32) -> (i32, i32) {
    %c0_i32 = arith.constant 0 : i32
    %c0_i32_0 = arith.constant 0 : i32
    return %arg0, %c0_i32 : i32, i32
  }
  func.func @transform_1(%arg0: i32, %arg1: i32) -> (i32, i32) {
    %c0_i32 = arith.constant 0 : i32
    %c0_i32_0 = arith.constant 0 : i32
    return %arg0, %c0_i32 : i32, i32
  }
  func.func @transform_2(%arg0: i32, %arg1: i32) -> (i32, i32) {
    %c0_i32 = arith.constant 0 : i32
    %c0_i32_0 = arith.constant 0 : i32
    return %arg0, %c0_i32 : i32, i32
  }
  func.func @transform_3(%arg0: i32, %arg1: i32) -> (i32, i32, i32) {
    %c0_i32 = arith.constant 0 : i32
    %c0_i32_0 = arith.constant 0 : i32
    %c0_i32_1 = arith.constant 0 : i32
    return %arg1, %c0_i32, %c0_i32_0 : i32, i32, i32
  }
  func.func @transform_4(%arg0: i32, %arg1: i32) -> (i32, i32, i32) {
    %c0_i32 = arith.constant 0 : i32
    %c0_i32_0 = arith.constant 0 : i32
    return %arg1, %arg0, %c0_i32 : i32, i32, i32
  }
}

</mosaic_0001>

<llo_original>
// kernel: tpu_custom_call.1
$region0: #{tpu_custom_call.1}
  #allocation0 [shape = 'u32[]', space=smem, size = 0x4, offset = 0x4, fixed_abs, tag = 'smem constant byte address 0x4 - core index']
  #allocation1 [shape = 'u32[144,128]{1,0:T(1,128)}', space=vmem, size = 0x12000, scoped, tag = 'internal scratch']
  %s0 = inlined_call_operand.vmem [shape: f32[32,8], index: 0, kind: input, shape index: {}]
  %s1 = inlined_call_operand.vmem [shape: f32[32,8], index: 1, kind: input, shape index: {}]
  %s2 = inlined_call_operand.vmem [shape: f32[32,16], index: 2, kind: input, shape index: {}]
  %s3 = inlined_call_operand.vmem [shape: f32[2,8,32], index: 3, kind: input, shape index: {}]
  %s4 = inlined_call_operand.hbm [shape: f32[2,32,80], index: 4, kind: output, shape index: {}]
  %s5 = sld [smem:[#allocation0]]
  $region49: #{tpu_custom_call.1} parent=0
    _
  %s7 = ssub.s32 1, %s5
  %s8 = scalar_select 0, %s7, %s5
  $region1: #{tpu_custom_call.1} parent=0
    #allocation2 [shape = 'u8[32768]{0}', space=vmem, size = 0x8000, scoped, tag = 'output window, operand 0']
    #allocation3 [shape = 's32[2]{0}', space=sflag, size = 0x8, scoped, tag = 'scoped memory for tpu_custom_call.1']
    %9 = vsyncpa [#allocation3], 0
    %s10 = scalar_lea.sflag [#allocation3], 1
    %11 = vsyncpa %s10, 0
    loop: start=0, step=1, limit=4
    $region2: #{tpu_custom_call.1} parent=1 // loop_pre_header
      _
    $region3: #{tpu_custom_call.1} parent=1 // loop_header
      %s13 = sphi 0, %s17
      %p14 = scmp.ge.s32.totalorder %s13, 4
      %s20 = sphi 0, %s32
      %s21 = sphi 0, %s28
      %s22 = sphi 0, %s20
      %s23 = sphi 0, %s21
      %s24 = sphi 0, %s22
      %s25 = sphi 0, %s23
      %s35 = sphi 0, %s37
      %s38 = sphi 0, %s35
      %s39 = sphi 0, %s38
      %s55 = sphi 0, %s39
      %s61 = sphi 0, %s63
      %s64 = sphi 0, %s61
      %s65 = sphi 0, %s64
      %s81 = sphi 0, %s65
      %s87 = sphi 0, %s89
      %s90 = sphi 0, %s87
      %s91 = sphi 0, %s90
      %s107 = sphi 0, %s91
      %s113 = sphi 0, %s115
      %s116 = sphi 0, %s113
      %s117 = sphi 0, %s116
      %s133 = sphi 0, %s117
      %s141 = sphi 0, %s143
      %s144 = sphi 0, %s141
      %s145 = sphi 0, %s144
      %s161 = sphi 0, %s145
    $region4: #{tpu_custom_call.1} parent=1 // loop_header_branch
      %16 = sbr.rel (%p14) target = $region8
    $region5: #{tpu_custom_call.1} parent=1 // loop_body
      %s18 = ssub.s32 %s13, 1
      %s19 = ssub.s32 %s13, 2
      %s26 = sadd.s32 1, %s21
      %p27 = scmp.ge.s32.totalorder %s26, 2
      %s28 = scalar_select %p27, 0, %s26
      %s29 = sadd.s32 1, %s20
      %s30 = scalar_select %p27, %s29, %s20
      %p31 = scmp.ge.s32.totalorder %s30, 1
      %s32 = scalar_select %p31, 0, %s30
      %s33 = ssub.s32 %s20, %s32
      %p34 = scmp.eq.s32.totalorder %s33, 0
      %s36 = sadd.s32 %s35, 1
      %s37 = scalar_select %p34, %s35, %s36
      %p40 = pneg %p34
      %p41 = scmp.eq.s32.totalorder %s13, 1
      %p42 = por %p40, %p41
      %p43 = scmp.ne.s32.totalorder %s35, %s38
      %p44 = scmp.eq.s32.totalorder %s13, 0
      %p45 = por %p43, %p44
      %p46 = scmp.ne.s32.totalorder %s35, %s38
      %p47 = scmp.eq.s32.totalorder %s18, 1
      %p48 = por %p46, %p47
      %p49 = scmp.ne.s32.totalorder %s38, %s39
      %p50 = scmp.eq.s32.totalorder %s18, 0
      %p51 = por %p49, %p50
      %p52 = scmp.ne.s32.totalorder %s38, %s39
      %p53 = scmp.eq.s32.totalorder %s19, 1
      %p54 = por %p52, %p53
      %p56 = scmp.ne.s32.totalorder %s39, %s55
      %p57 = scmp.eq.s32.totalorder %s19, 0
      %p58 = por %p56, %p57
      %s59 = ssub.s32 %s20, %s32
      %p60 = scmp.eq.s32.totalorder %s59, 0
      %s62 = sadd.s32 %s61, 1
      %s63 = scalar_select %p60, %s61, %s62
      %p66 = pneg %p60
      %p67 = scmp.eq.s32.totalorder %s13, 1
      %p68 = por %p66, %p67
      %p69 = scmp.ne.s32.totalorder %s61, %s64
      %p70 = scmp.eq.s32.totalorder %s13, 0
      %p71 = por %p69, %p70
      %p72 = scmp.ne.s32.totalorder %s61, %s64
      %p73 = scmp.eq.s32.totalorder %s18, 1
      %p74 = por %p72, %p73
      %p75 = scmp.ne.s32.totalorder %s64, %s65
      %p76 = scmp.eq.s32.totalorder %s18, 0
      %p77 = por %p75, %p76
      %p78 = scmp.ne.s32.totalorder %s64, %s65
      %p79 = scmp.eq.s32.totalorder %s19, 1
      %p80 = por %p78, %p79
      %p82 = scmp.ne.s32.totalorder %s65, %s81
      %p83 = scmp.eq.s32.totalorder %s19, 0
      %p84 = por %p82, %p83
      %s85 = ssub.s32 %s20, %s32
      %p86 = scmp.eq.s32.totalorder %s85, 0
      %s88 = sadd.s32 %s87, 1
      %s89 = scalar_select %p86, %s87, %s88
      %p92 = pneg %p86
      %p93 = scmp.eq.s32.totalorder %s13, 1
      %p94 = por %p92, %p93
      %p95 = scmp.ne.s32.totalorder %s87, %s90
      %p96 = scmp.eq.s32.totalorder %s13, 0
      %p97 = por %p95, %p96
      %p98 = scmp.ne.s32.totalorder %s87, %s90
      %p99 = scmp.eq.s32.totalorder %s18, 1
      %p100 = por %p98, %p99
      %p101 = scmp.ne.s32.totalorder %s90, %s91
      %p102 = scmp.eq.s32.totalorder %s18, 0
      %p103 = por %p101, %p102
      %p104 = scmp.ne.s32.totalorder %s90, %s91
      %p105 = scmp.eq.s32.totalorder %s19, 1
      %p106 = por %p104, %p105
      %p108 = scmp.ne.s32.totalorder %s91, %s107
      %p109 = scmp.eq.s32.totalorder %s19, 0
      %p110 = por %p108, %p109
      %s111 = ssub.s32 %s21, %s28
      %p112 = scmp.eq.s32.totalorder %s111, 0
      %s114 = sadd.s32 %s113, 1
      %s115 = scalar_select %p112, %s113, %s114
      %p118 = pneg %p112
      %p119 = scmp.eq.s32.totalorder %s13, 1
      %p120 = por %p118, %p119
      %p121 = scmp.ne.s32.totalorder %s113, %s116
      %p122 = scmp.eq.s32.totalorder %s13, 0
      %p123 = por %p121, %p122
      %p124 = scmp.ne.s32.totalorder %s113, %s116
      %p125 = scmp.eq.s32.totalorder %s18, 1
      %p126 = por %p124, %p125
      %p127 = scmp.ne.s32.totalorder %s116, %s117
      %p128 = scmp.eq.s32.totalorder %s18, 0
      %p129 = por %p127, %p128
      %p130 = scmp.ne.s32.totalorder %s116, %s117
      %p131 = scmp.eq.s32.totalorder %s19, 1
      %p132 = por %p130, %p131
      %p134 = scmp.ne.s32.totalorder %s117, %s133
      %p135 = scmp.eq.s32.totalorder %s19, 0
      %p136 = por %p134, %p135
      %s137 = ssub.s32 %s21, %s28
      %s138 = ssub.s32 %s20, %s32
      %s139 = sor.u32 %s137, %s138
      %p140 = scmp.eq.s32.totalorder %s139, 0
      %s142 = sadd.s32 %s141, 1
      %s143 = scalar_select %p140, %s141, %s142
      %p146 = pneg %p140
      %p147 = scmp.eq.s32.totalorder %s13, 1
      %p148 = por %p146, %p147
      %p149 = scmp.ne.s32.totalorder %s141, %s144
      %p150 = scmp.eq.s32.totalorder %s13, 0
      %p151 = por %p149, %p150
      %p152 = scmp.ne.s32.totalorder %s141, %s144
      %p153 = scmp.eq.s32.totalorder %s18, 1
      %p154 = por %p152, %p153
      %p155 = scmp.ne.s32.totalorder %s144, %s145
      %p156 = scmp.eq.s32.totalorder %s18, 0
      %p157 = por %p155, %p156
      %p158 = scmp.ne.s32.totalorder %s144, %s145
      %p159 = scmp.eq.s32.totalorder %s19, 1
      %p160 = por %p158, %p159
      %p162 = scmp.ne.s32.totalorder %s145, %s161
      %p163 = scmp.eq.s32.totalorder %s19, 0
      %p164 = por %p162, %p163
      %p165 = scmp.le.s32.totalorder 1, %s13
      %p166 = scmp.lt.s32.totalorder %s13, 3
      %p167 = pnand %p165, %p166
      %p168 = pneg %p167
      // Predicated region
      $region9: #{tpu_custom_call.1} parent=5 // pred_check
        _
      $region10: #{tpu_custom_call.1} parent=5 // pred_check_branch
        %170 = sbr.rel (%p167) target = $region12
      $region11: #{tpu_custom_call.1} parent=5 // pred_region
        %s171 = ssub.s32 %s13, 1
        // Predicated region
        $region13: #{tpu_custom_call.1} parent=11 // pred_check
          %p172 = pneg %p51
        $region14: #{tpu_custom_call.1} parent=11 // pred_check_branch
          %174 = sbr.rel (%p172) target = $region16
        $region15: #{tpu_custom_call.1} parent=11 // pred_region
          %s175 = smul.u32 4, %s22
          %p176 = scmp.lt.s32.totalorder %s175, 3
          %s177 = scalar_select %p176, %s175, 3
          %s178 = smul.addr %s177, 8
          %s179 = scalar_lea.vmem %s0, %s178
          %s180 = smul.u32 4, %s22
        $region16: #{tpu_custom_call.1} parent=11 // pred_fallthru
          _
        // Predicated region
        $region17: #{tpu_custom_call.1} parent=11 // pred_check
          %p181 = pneg %p77
        $region18: #{tpu_custom_call.1} parent=11 // pred_check_branch
          %183 = sbr.rel (%p181) target = $region20
        $region19: #{tpu_custom_call.1} parent=11 // pred_region
          %s184 = smul.u32 4, %s22
          %p185 = scmp.lt.s32.totalorder %s184, 3
          %s186 = scalar_select %p185, %s184, 3
          %s187 = smul.addr %s186, 8
          %s188 = scalar_lea.vmem %s1, %s187
          %s189 = smul.u32 4, %s22
        $region20: #{tpu_custom_call.1} parent=11 // pred_fallthru
          _
        // Predicated region
        $region21: #{tpu_custom_call.1} parent=11 // pred_check
          %p190 = pneg %p103
        $region22: #{tpu_custom_call.1} parent=11 // pred_check_branch
          %192 = sbr.rel (%p190) target = $region24
        $region23: #{tpu_custom_call.1} parent=11 // pred_region
          %s193 = smul.u32 4, %s22
          %p194 = scmp.lt.s32.totalorder %s193, 3
          %s195 = scalar_select %p194, %s193, 3
          %s196 = smul.addr %s195, 8
          %s197 = scalar_lea.vmem %s2, %s196
          %s198 = smul.u32 4, %s22
        $region24: #{tpu_custom_call.1} parent=11 // pred_fallthru
          _
      $region12: #{tpu_custom_call.1} parent=5 // pred_fallthru
        _
      %p199 = scmp.lt.s32.totalorder %s13, 2
      // Predicated region
      $region25: #{tpu_custom_call.1} parent=5 // pred_check
        %p200 = pneg %p199
      $region26: #{tpu_custom_call.1} parent=5 // pred_check_branch
        %202 = sbr.rel (%p200) target = $region28
      $region27: #{tpu_custom_call.1} parent=5 // pred_region
        // Predicated region
        $region29: #{tpu_custom_call.1} parent=27 // pred_check
          %p203 = pneg %p123
        $region30: #{tpu_custom_call.1} parent=27 // pred_check_branch
          %205 = sbr.rel (%p203) target = $region32
        $region31: #{tpu_custom_call.1} parent=27 // pred_region
          %p206 = scmp.lt.s32.totalorder %s21, 1
          %s207 = scalar_select %p206, %s21, 1
          %s208 = smul.addr %s207, 8
          %s209 = scalar_lea.vmem %s3, %s208
        $region32: #{tpu_custom_call.1} parent=27 // pred_fallthru
          _
      $region28: #{tpu_custom_call.1} parent=5 // pred_fallthru
        _
      %p210 = scmp.le.s32.totalorder 1, %s13
      %p211 = scmp.lt.s32.totalorder %s13, 3
      %p212 = pnand %p210, %p211
      %p213 = pneg %p212
      // Predicated region
      $region33: #{tpu_custom_call.1} parent=5 // pred_check
        _
      $region34: #{tpu_custom_call.1} parent=5 // pred_check_branch
        %215 = sbr.rel (%p212) target = $region36
      $region35: #{tpu_custom_call.1} parent=5 // pred_region
        %s216 = ssub.s32 %s13, 1
        %s217 = smul.u32 4, %s22
        %p218 = scmp.lt.s32.totalorder %s217, 3
        %s219 = scalar_select %p218, %s217, 3
        %s220 = smul.addr %s219, 8
        %s221 = scalar_lea.vmem %s0, %s220
        %p222 = pneg %p51
        %p223 = pneg %p48
        %s224 = smul.u32 4, %s22
        %p225 = scmp.lt.s32.totalorder %s224, 3
        %s226 = scalar_select %p225, %s224, 3
        %s227 = smul.addr %s226, 8
        %s228 = scalar_lea.vmem %s1, %s227
        %p229 = pneg %p77
        %p230 = pneg %p74
        %s231 = smul.u32 4, %s22
        %p232 = scmp.lt.s32.totalorder %s231, 3
        %s233 = scalar_select %p232, %s231, 3
        %s234 = smul.addr %s233, 8
        %s235 = scalar_lea.vmem %s2, %s234
        %p236 = pneg %p103
        %p237 = pneg %p100
        %p238 = scmp.lt.s32.totalorder %s23, 1
        %s239 = scalar_select %p238, %s23, 1
        %s240 = smul.addr %s239, 8
        %s241 = scalar_lea.vmem %s3, %s240
        %p242 = pneg %p129
        %p243 = pneg %p126
        %p244 = pneg %p157
        %p245 = pneg %p154
        %s246 = sand.u32 %s144, 1
        %s247 = scalar_lea.sflag [#allocation3], %s246
        %s248 = sand.u32 %s144, 1
        %s249 = smul.addr %s248, 32
        %s250 = scalar_lea.vmem [#allocation2], %s249
        %s251 = smul.u32 4, %s22
        %p252 = scmp.lt.s32.totalorder %s251, 3
        %s253 = scalar_select %p252, %s251, 3
        %s254 = smul.addr %s253, 8
        %s255 = scalar_lea.vmem %s0, %s254
        %s256 = smul.u32 4, %s22
        %s257 = smul.u32 4, %s22
        %p258 = scmp.lt.s32.totalorder %s257, 3
        %s259 = scalar_select %p258, %s257, 3
        %s260 = smul.addr %s259, 8
        %s261 = scalar_lea.vmem %s1, %s260
        %s262 = smul.u32 4, %s22
        %s263 = smul.u32 4, %s22
        %p264 = scmp.lt.s32.totalorder %s263, 3
        %s265 = scalar_select %p264, %s263, 3
        %s266 = smul.addr %s265, 8
        %s267 = scalar_lea.vmem %s2, %s266
        %s268 = smul.u32 4, %s22
        %p269 = scmp.lt.s32.totalorder %s23, 1
        %s270 = scalar_select %p269, %s23, 1
        %s271 = smul.addr %s270, 8
        %s272 = scalar_lea.vmem %s3, %s271
        %s273 = smul.u32 4, %s22
        %v274 = vld [vmem:[%s272] sm:$0xff]
        %v275 = vld [vmem:[%s255] sm:$0xff]
        %v276 = vld [vmem:[%s255 + $0x8] sm:$0xff]
        %v277 = vld [vmem:[%s255 + $0x10] sm:$0xff]
        %v278 = vld [vmem:[%s255 + $0x18] sm:$0xff]
        %vm279 = vcmask 64512
        %v281 = vsel %vm279, %v275, 0
        %v284 = vsel %vm279, %v276, 0
        %v287 = vsel %vm279, %v277, 0
        %v290 = vsel %vm279, %v278, 0
        %292 = vmatprep.subr.mxu0 0.0
        %293 = vmatpush1.msra.mxu0 %v274
        %294 = vmatprep.subr.mxu0 0.0
        %295 = vmatpush1.msra.mxu0 0.0
        %296 = vmatprep.subr.mxu0 0.0
        %297 = vmatpush1.msra.mxu0 0.0
        %298 = vmatprep.subr.mxu0 0.0
        %299 = vmatpush1.msra.mxu0 0.0
        %300 = vmatprep.subr.mxu0 0.0
        %301 = vmatpush1.msra.mxu0 0.0
        %302 = vmatprep.subr.mxu0 0.0
        %303 = vmatpush1.msra.mxu0 0.0
        %304 = vmatprep.subr.mxu0 0.0
        %305 = vmatpush1.msra.mxu0 0.0
        %306 = vmatprep.subr.mxu0 0.0
        %307 = vmatpush1.msra.mxu0 0.0
        %308 = vmatprep.subr.mxu0 0.0
        %309 = vmatpush1.msra.mxu0 0.0
        %310 = vmatprep.subr.mxu0 0.0
        %311 = vmatpush1.msra.mxu0 0.0
        %312 = vmatprep.subr.mxu0 0.0
        %313 = vmatpush1.msra.mxu0 0.0
        %314 = vmatprep.subr.mxu0 0.0
        %315 = vmatpush1.msra.mxu0 0.0
        %316 = vmatprep.subr.mxu0 0.0
        %317 = vmatpush1.msra.mxu0 0.0
        %318 = vmatprep.subr.mxu0 0.0
        %319 = vmatpush1.msra.mxu0 0.0
        %320 = vmatprep.subr.mxu0 0.0
        %321 = vmatpush1.msra.mxu0 0.0
        %322 = vmatprep.subr.mxu0 0.0
        %323 = vmatpush1.msra.mxu0 0.0
        %324 = vmatprep.subr.mxu0 0.0
        %325 = vmatpush1.msra.mxu0 0.0
        %326 = vmatprep.subr.mxu0 0.0
        %327 = vmatpush1.msra.mxu0 0.0
        %328 = vmatprep.subr.mxu0 0.0
        %329 = vmatpush1.msra.mxu0 0.0
        %330 = vmatprep.subr.mxu0 0.0
        %331 = vmatpush1.msra.mxu0 0.0
        %332 = vmatprep.subr.mxu0 0.0
        %333 = vmatpush1.msra.mxu0 0.0
        %334 = vmatprep.subr.mxu0 0.0
        %335 = vmatpush1.msra.mxu0 0.0
        %336 = vmatprep.subr.mxu0 0.0
        %337 = vmatpush1.msra.mxu0 0.0
        %338 = vmatprep.subr.mxu0 0.0
        %339 = vmatpush1.msra.mxu0 0.0
        %340 = vmatprep.subr.mxu0 0.0
        %341 = vmatpush1.msra.mxu0 0.0
        %342 = vmatprep.subr.mxu0 0.0
        %343 = vmatpush1.msra.mxu0 0.0
        %344 = vmatprep.subr.mxu0 0.0
        %345 = vmatpush1.msra.mxu0 0.0
        %346 = vmatprep.subr.mxu0 0.0
        %347 = vmatpush1.msra.mxu0 0.0
        %348 = vmatprep.subr.mxu0 0.0
        %349 = vmatpush1.msra.mxu0 0.0
        %350 = vmatprep.subr.mxu0 0.0
        %351 = vmatpush1.msra.mxu0 0.0
        %352 = vmatprep.subr.mxu0 0.0
        %353 = vmatpush1.msra.mxu0 0.0
        %354 = vmatprep.subr.mxu0 0.0
        %355 = vmatpush1.msra.mxu0 0.0
        %356 = vmatprep.mubr.f32.mxu0 0.0
        %357 = vmatmul.mubr.f32.gmra.mrb[0].mxu0 %v281
        %v358 = vpop.f32.mrb[0].mxu0
        %v359 = vadd.f32 0.0, %v358
        %v360 = vpop.f32.mrb[0].mxu0
        %361 = vmatprep.mubr.f32.mxu0 0.0
        %362 = vmatmul.mubr.f32.gmra.mrb[0].mxu0 %v284
        %v363 = vpop.f32.mrb[0].mxu0
        %v364 = vadd.f32 0.0, %v363
        %v365 = vpop.f32.mrb[0].mxu0
        %366 = vmatprep.mubr.f32.mxu0 0.0
        %367 = vmatmul.mubr.f32.gmra.mrb[0].mxu0 %v287
        %v368 = vpop.f32.mrb[0].mxu0
        %v369 = vadd.f32 0.0, %v368
        %v370 = vpop.f32.mrb[0].mxu0
        %371 = vmatprep.mubr.f32.mxu0 0.0
        %372 = vmatmul.mubr.f32.gmra.mrb[0].mxu0 %v290
        %v373 = vpop.f32.mrb[0].mxu0
        %v374 = vadd.f32 0.0, %v373
        %v375 = vpop.f32.mrb[0].mxu0
        %376 = vdwg.mxu0
        %v377 = vld [vmem:[%s261] sm:$0xff]
        %v378 = vld [vmem:[%s261 + $0x8] sm:$0xff]
        %v379 = vld [vmem:[%s261 + $0x10] sm:$0xff]
        %v380 = vld [vmem:[%s261 + $0x18] sm:$0xff]
        %v382 = vsel %vm279, %v377, 0
        %v385 = vsel %vm279, %v378, 0
        %v388 = vsel %vm279, %v379, 0
        %v391 = vsel %vm279, %v380, 0
        %393 = vmatprep.subr.mxu0 0.0
        %394 = vmatpush1.msra.mxu0 %v274
        %395 = vmatprep.subr.mxu0 0.0
        %396 = vmatpush1.msra.mxu0 0.0
        %397 = vmatprep.subr.mxu0 0.0
        %398 = vmatpush1.msra.mxu0 0.0
        %399 = vmatprep.subr.mxu0 0.0
        %400 = vmatpush1.msra.mxu0 0.0
        %401 = vmatprep.subr.mxu0 0.0
        %402 = vmatpush1.msra.mxu0 0.0
        %403 = vmatprep.subr.mxu0 0.0
        %404 = vmatpush1.msra.mxu0 0.0
        %405 = vmatprep.subr.mxu0 0.0
        %406 = vmatpush1.msra.mxu0 0.0
        %407 = vmatprep.subr.mxu0 0.0
        %408 = vmatpush1.msra.mxu0 0.0
        %409 = vmatprep.subr.mxu0 0.0
        %410 = vmatpush1.msra.mxu0 0.0
        %411 = vmatprep.subr.mxu0 0.0
        %412 = vmatpush1.msra.mxu0 0.0
        %413 = vmatprep.subr.mxu0 0.0
        %414 = vmatpush1.msra.mxu0 0.0
        %415 = vmatprep.subr.mxu0 0.0
        %416 = vmatpush1.msra.mxu0 0.0
        %417 = vmatprep.subr.mxu0 0.0
        %418 = vmatpush1.msra.mxu0 0.0
        %419 = vmatprep.subr.mxu0 0.0
        %420 = vmatpush1.msra.mxu0 0.0
        %421 = vmatprep.subr.mxu0 0.0
        %422 = vmatpush1.msra.mxu0 0.0
        %423 = vmatprep.subr.mxu0 0.0
        %424 = vmatpush1.msra.mxu0 0.0
        %425 = vmatprep.subr.mxu0 0.0
        %426 = vmatpush1.msra.mxu0 0.0
        %427 = vmatprep.subr.mxu0 0.0
        %428 = vmatpush1.msra.mxu0 0.0
        %429 = vmatprep.subr.mxu0 0.0
        %430 = vmatpush1.msra.mxu0 0.0
        %431 = vmatprep.subr.mxu0 0.0
        %432 = vmatpush1.msra.mxu0 0.0
        %433 = vmatprep.subr.mxu0 0.0
        %434 = vmatpush1.msra.mxu0 0.0
        %435 = vmatprep.subr.mxu0 0.0
        %436 = vmatpush1.msra.mxu0 0.0
        %437 = vmatprep.subr.mxu0 0.0
        %438 = vmatpush1.msra.mxu0 0.0
        %439 = vmatprep.subr.mxu0 0.0
        %440 = vmatpush1.msra.mxu0 0.0
        %441 = vmatprep.subr.mxu0 0.0
        %442 = vmatpush1.msra.mxu0 0.0
        %443 = vmatprep.subr.mxu0 0.0
        %444 = vmatpush1.msra.mxu0 0.0
        %445 = vmatprep.subr.mxu0 0.0
        %446 = vmatpush1.msra.mxu0 0.0
        %447 = vmatprep.subr.mxu0 0.0
        %448 = vmatpush1.msra.mxu0 0.0
        %449 = vmatprep.subr.mxu0 0.0
        %450 = vmatpush1.msra.mxu0 0.0
        %451 = vmatprep.subr.mxu0 0.0
        %452 = vmatpush1.msra.mxu0 0.0
        %453 = vmatprep.subr.mxu0 0.0
        %454 = vmatpush1.msra.mxu0 0.0
        %455 = vmatprep.subr.mxu0 0.0
        %456 = vmatpush1.msra.mxu0 0.0
        %457 = vmatprep.mubr.f32.mxu0 0.0
        %458 = vmatmul.mubr.f32.gmra.mrb[0].mxu0 %v382
        %v459 = vpop.f32.mrb[0].mxu0
        %v460 = vadd.f32 0.0, %v459
        %v461 = vpop.f32.mrb[0].mxu0
        %462 = vmatprep.mubr.f32.mxu0 0.0
        %463 = vmatmul.mubr.f32.gmra.mrb[0].mxu0 %v385
        %v464 = vpop.f32.mrb[0].mxu0
        %v465 = vadd.f32 0.0, %v464
        %v466 = vpop.f32.mrb[0].mxu0
        %467 = vmatprep.mubr.f32.mxu0 0.0
        %468 = vmatmul.mubr.f32.gmra.mrb[0].mxu0 %v388
        %v469 = vpop.f32.mrb[0].mxu0
        %v470 = vadd.f32 0.0, %v469
        %v471 = vpop.f32.mrb[0].mxu0
        %472 = vmatprep.mubr.f32.mxu0 0.0
        %473 = vmatmul.mubr.f32.gmra.mrb[0].mxu0 %v391
        %v474 = vpop.f32.mrb[0].mxu0
        %v475 = vadd.f32 0.0, %v474
        %v476 = vpop.f32.mrb[0].mxu0
        %477 = vdwg.mxu0
        %vm478 = vcmask 261120
        %479 = vst.msk [vmem:[%s250] sm:$0xff] %vm478, %v359
        %480 = vst.msk [vmem:[%s250 + $0x8] sm:$0xff] %vm478, %v364
        %481 = vst.msk [vmem:[%s250 + $0x10] sm:$0xff] %vm478, %v369
        %482 = vst.msk [vmem:[%s250 + $0x18] sm:$0xff] %vm478, %v374
        %487 = vrot.lane.b32.xlu0 %v460, 32
        %v488 = vpop.permute.xlu0 %487
        %489 = vrot.lane.b32.xlu0 %v465, 32
        %v490 = vpop.permute.xlu0 %489
        %491 = vrot.lane.b32.xlu0 %v470, 32
        %v492 = vpop.permute.xlu0 %491
        %493 = vrot.lane.b32.xlu0 %v475, 32
        %v494 = vpop.permute.xlu0 %493
        %vm499 = vcmask 523520
        %500 = vst.msk [vmem:[%s250] sm:$0xff] %vm499, %v488
        %501 = vst.msk [vmem:[%s250 + $0x8] sm:$0xff] %vm499, %v490
        %502 = vst.msk [vmem:[%s250 + $0x10] sm:$0xff] %vm499, %v492
        %503 = vst.msk [vmem:[%s250 + $0x18] sm:$0xff] %vm499, %v494
        %v504 = vld [vmem:[%s267] sm:$0xff]
        %v505 = vld [vmem:[%s267 + $0x8] sm:$0xff]
        %v506 = vld [vmem:[%s267 + $0x10] sm:$0xff]
        %v507 = vld [vmem:[%s267 + $0x18] sm:$0xff]
        %512 = vrot.lane.b32.xlu0 %v504, 64
        %v513 = vpop.permute.xlu0 %512
        %514 = vrot.lane.b32.xlu0 %v505, 64
        %v515 = vpop.permute.xlu0 %514
        %516 = vrot.lane.b32.xlu0 %v506, 64
        %v517 = vpop.permute.xlu0 %516
        %518 = vrot.lane.b32.xlu0 %v507, 64
        %v519 = vpop.permute.xlu0 %518
        %vm524 = vcmask 654848
        %525 = vst.msk [vmem:[%s250] sm:$0xff] %vm524, %v513
        %526 = vst.msk [vmem:[%s250 + $0x8] sm:$0xff] %vm524, %v515
        %527 = vst.msk [vmem:[%s250 + $0x10] sm:$0xff] %vm524, %v517
        %528 = vst.msk [vmem:[%s250 + $0x18] sm:$0xff] %vm524, %v519
        %s529 = sand.u32 %s144, 1
        %s530 = scalar_lea.sflag [#allocation3], %s529
        %s531 = sand.u32 %s144, 1
        %s532 = smul.addr %s531, 32
        %s533 = scalar_lea.vmem [#allocation2], %s532
        // Predicated region
        $region37: #{tpu_custom_call.1} parent=35 // pred_check
          %p534 = pneg %p154
        $region38: #{tpu_custom_call.1} parent=35 // pred_check_branch
          %536 = sbr.rel (%p534) target = $region40
        $region39: #{tpu_custom_call.1} parent=35 // pred_region
          %s537 = smul.u32 4, %s22
          %s539 = ssub.s32 512, 512
          %540 = vsyncadd %s530, %s539
          %s541 = smul.addr %s23, 4
          %s542 = sadd.s32 %s537, %s541
          %s543 = smul.addr %s542, 128
          %s544 = scalar_lea.hbm %s4, %s543
          %s545 = sshll.u32 %s533, 4
          %s546 = int_to_ptr.vmem [resolvable:$true] %s545
          %551 = dma.vmem_to_hbm [thread:$0]  %s546, 512, %s544, %s530, 128, 128, 8
        $region40: #{tpu_custom_call.1} parent=35 // pred_fallthru
          _
      $region36: #{tpu_custom_call.1} parent=5 // pred_fallthru
        _
      %p552 = scmp.le.s32.totalorder 2, %s13
      // Predicated region
      $region41: #{tpu_custom_call.1} parent=5 // pred_check
        %p553 = pneg %p552
      $region42: #{tpu_custom_call.1} parent=5 // pred_check_branch
        %555 = sbr.rel (%p553) target = $region44
      $region43: #{tpu_custom_call.1} parent=5 // pred_region
        %s556 = ssub.s32 %s13, 2
        // Predicated region
        $region45: #{tpu_custom_call.1} parent=43 // pred_check
          %p557 = pneg %p160
        $region46: #{tpu_custom_call.1} parent=43 // pred_check_branch
          %559 = sbr.rel (%p557) target = $region48
        $region47: #{tpu_custom_call.1} parent=43 // pred_region
          %s560 = sand.u32 %s145, 1
          %s561 = scalar_lea.sflag [#allocation3], %s560
          %s562 = sand.u32 %s145, 1
          %s563 = smul.addr %s562, 32
          %s564 = scalar_lea.vmem [#allocation2], %s563
          %565 = dma.done %s561, 512
        $region48: #{tpu_custom_call.1} parent=43 // pred_fallthru
          _
      $region44: #{tpu_custom_call.1} parent=5 // pred_fallthru
        _
    $region6: #{tpu_custom_call.1} parent=1 // loop_footer
      %s17 = sadd.s32 1, %s13
    $region7: #{tpu_custom_call.1} parent=1 // loop_footer_branch
      %12 = sbr.rel target = $region3
    $region8: #{tpu_custom_call.1} parent=1 // loop_exit
      _
    %566 = vsyncpa [#allocation3], 1
    %s567 = scalar_lea.sflag [#allocation3], 1
    %568 = vsyncpa %s567, 1

</llo_original>
